<compile_context>
chip_gen: v5e
topology: v5e:2x2
jax: 0.10.0
libtpu: 0.0.40
codegen_flags: <defaults>
</compile_context>

<pallas_src>
import functools

import jax
import jax.numpy as jnp
from jax.experimental import pallas as pl
from jax.experimental.pallas import tpu as pltpu

BN_EPS = 1e-5


# --------------------------------------------------------------------------
# Pass 1: layer1 matmul + per-tile BN partial statistics
# --------------------------------------------------------------------------
def layer1_stats_kernel(x_ref, w1_ref, h_ref, psum_ref, psumsq_ref):
    # In-kernel bf16 casts (VPU work hidden under the MXU); avoids a separate
    # wrapper-side XLA cast pass over x / W1.
    x_bf = x_ref[...].astype(jnp.bfloat16)
    w1_bf = w1_ref[...].astype(jnp.bfloat16)
    h = jnp.dot(x_bf, w1_bf, preferred_element_type=jnp.float32)

    # Partial BN statistics from the f32 MXU result (before the bf16
    # downcast of h).  Each grid step writes its own row, so the batch axis
    # stays "parallel" (both TensorCores usable on v7x).
    psum_ref[...] = jnp.sum(h, axis=0, keepdims=True).reshape(1, 1, -1)
    psumsq_ref[...] = jnp.sum(h * h, axis=0, keepdims=True).reshape(1, 1, -1)

    # h round-trips HBM exactly once; store it in bf16 to halve that traffic.
    h_ref[...] = h.astype(jnp.bfloat16)


# --------------------------------------------------------------------------
# Pass 2: fused BN (scale/shift) + ReLU + layer2 matmul + bias
# --------------------------------------------------------------------------
def layer2_kernel(h_ref, sum_ref, sumsq_ref, gamma_ref, beta_ref,
                  w2_ref, b2_ref, o_ref, *, inv_batch):
    mean = sum_ref[...] * inv_batch                          # (1, hidden)
    # Clamp: E[h^2] - E[h]^2 can go slightly negative from f32 cancellation.
    var = jnp.maximum(sumsq_ref[...] * inv_batch - mean * mean, 0.0)
    scale = gamma_ref[...] * jax.lax.rsqrt(var + BN_EPS)
    shift = beta_ref[...] - mean * scale

    # One fused elementwise pass: normalize + affine + ReLU.
    a = jnp.maximum(h_ref[...].astype(jnp.float32) * scale + shift, 0.0)

    out = jnp.dot(a.astype(jnp.bfloat16), w2_ref[...].astype(jnp.bfloat16),
                  preferred_element_type=jnp.float32)
    o_ref[...] = (out + b2_ref[...]).astype(o_ref.dtype)


# --------------------------------------------------------------------------
# Wrapper helpers
# --------------------------------------------------------------------------
def _round_up(n, m):
    return (n + m - 1) // m * m


def _pick_batch_tile(batch, target):
    """Multiple-of-128 tile that minimizes zero-padding (prefer larger tile)."""
    target = max(128, (min(target, max(batch, 128)) // 128) * 128)
    best_tm, best_pad = 128, _round_up(batch, 128)
    tm = 128
    while tm <= target:
        pad = _round_up(batch, tm)
        if pad <= best_pad:   # ties -> keep the larger tile
            best_tm, best_pad = tm, pad
        tm += 128
    return best_tm, best_pad


def _vmem_limit_bytes(tm, in_dim, hidden, out_dim):
    """Computed scoped-VMEM requirement (double-buffered blocks + temps)."""
    f32, bf16 = 4, 2
    # Pass 1: x / W1 / h / partials (x2 double-buffer) + in-kernel temporaries.
    p1 = 2 * (tm * in_dim * f32 + in_dim * hidden * f32
              + tm * hidden * bf16 + 2 * hidden * f32)
    p1 += tm * in_dim * bf16 + in_dim * hidden * bf16 + 2 * tm * hidden * f32
    # Pass 2.
    p2 = 2 * (tm * hidden * bf16 + 4 * hidden * f32
              + hidden * out_dim * f32 + out_dim * f32 + tm * out_dim * f32)
    p2 += (hidden * out_dim * bf16 + tm * hidden * f32
           + tm * hidden * bf16 + tm * out_dim * f32)
    need = max(p1, p2)
    # 2x headroom, 16 MiB floor; cap at 64 MiB so a tiling mistake fails at
    # compile time even on v7x's smaller per-TC VMEM.
    return min(max(2 * need + (4 << 20), 16 << 20), 64 << 20)


# --------------------------------------------------------------------------
# prediction_MLP forward
# --------------------------------------------------------------------------
def prediction_mlp(x, w1, b1, gamma, beta, w2, b2, *, tile_m=512):
    """SimSiam prediction_MLP forward (training-mode BatchNorm semantics)."""
    del b1  # cancelled by training-mode BN batch-mean subtraction

    B, in_dim = x.shape
    hidden = w1.shape[1]
    out_dim = w2.shape[1]

    gamma = gamma.reshape(1, hidden).astype(jnp.float32)
    beta = beta.reshape(1, hidden).astype(jnp.float32)
    b2 = b2.reshape(1, out_dim).astype(jnp.float32)

    tm, padded_b = _pick_batch_tile(B, tile_m)
    n_tiles = padded_b // tm
    if padded_b != B:
        # Zero rows contribute 0 to sum(h) and sum(h*h): BN stats stay exact
        # because we divide by the true batch size below.
        x = jnp.pad(x, ((0, padded_b - B), (0, 0)))

    vmem_limit = _vmem_limit_bytes(tm, in_dim, hidden, out_dim)
    grid = (n_tiles,)

    # ---- Pass 1: h = x @ W1 (bf16 out) + per-tile BN partials -------------
    h, psum, psumsq = pl.pallas_call(
        layer1_stats_kernel,
        out_shape=(
            jax.ShapeDtypeStruct((padded_b, hidden), jnp.bfloat16),
            jax.ShapeDtypeStruct((n_tiles, 1, hidden), jnp.float32),
            jax.ShapeDtypeStruct((n_tiles, 1, hidden), jnp.float32),
        ),
        grid=grid,
        in_specs=[
            pl.BlockSpec((tm, in_dim), lambda m: (m, 0)),        # x (tiled)
            pl.BlockSpec((in_dim, hidden), lambda m: (0, 0)),    # W1 (pinned)
        ],
        out_specs=(
            pl.BlockSpec((tm, hidden), lambda m: (m, 0)),        # h (tiled)
            pl.BlockSpec((1, 1, hidden), lambda m: (m, 0, 0)),   # partial sum
            pl.BlockSpec((1, 1, hidden), lambda m: (m, 0, 0)),   # partial sumsq
        ),
        compiler_params=pltpu.CompilerParams(
            dimension_semantics=("parallel",),
            vmem_limit_bytes=vmem_limit),
    )(x, w1)

    # Tiny (n_tiles, hidden) reduction of the per-tile partials.
    col_sum = jnp.sum(psum, axis=0)        # (1, hidden)
    col_sumsq = jnp.sum(psumsq, axis=0)    # (1, hidden)

    # ---- Pass 2: normalize + ReLU + layer2 ---------------------------------
    out = pl.pallas_call(
        functools.partial(layer2_kernel, inv_batch=1.0 / B),
        out_shape=jax.ShapeDtypeStruct((padded_b, out_dim), x.dtype),
        grid=grid,
        in_specs=[
            pl.BlockSpec((tm, hidden), lambda m: (m, 0)),        # h (tiled, bf16)
            pl.BlockSpec((1, hidden), lambda m: (0, 0)),         # sum
            pl.BlockSpec((1, hidden), lambda m: (0, 0)),         # sumsq
            pl.BlockSpec((1, hidden), lambda m: (0, 0)),         # gamma
            pl.BlockSpec((1, hidden), lambda m: (0, 0)),         # beta
            pl.BlockSpec((hidden, out_dim), lambda m: (0, 0)),   # W2 (pinned)
            pl.BlockSpec((1, out_dim), lambda m: (0, 0)),        # b2
        ],
        out_specs=pl.BlockSpec((tm, out_dim), lambda m: (m, 0)),
        compiler_params=pltpu.CompilerParams(
            dimension_semantics=("parallel",),
            vmem_limit_bytes=vmem_limit),
    )(h, col_sum, col_sumsq, gamma, beta, w2, b2)

    if padded_b != B:
        out = out[:B]
    return out


# --------------------------------------------------------------------------
# Pure-JAX reference (PyTorch forward in training mode; same bf16-in /
# f32-accumulate matmul precision as the kernels' MXU path).
# --------------------------------------------------------------------------
def reference_mlp(x, w1, b1, gamma, beta, w2, b2):
    h = jnp.dot(x.astype(jnp.bfloat16), w1.astype(jnp.bfloat16),
                preferred_element_type=jnp.float32) + b1.reshape(1, -1)
    mean = jnp.mean(h, axis=0, keepdims=True)
    var = jnp.mean((h - mean) ** 2, axis=0, keepdims=True)
    h = (h - mean) * jax.lax.rsqrt(var + BN_EPS)
    h = h * gamma.reshape(1, -1) + beta.reshape(1, -1)
    h = jnp.maximum(h, 0.0)
    return jnp.dot(h.astype(jnp.bfloat16), w2.astype(jnp.bfloat16),
                   preferred_element_type=jnp.float32) + b2.reshape(1, -1)


if __name__ == "__main__":
    # Small shapes consistent with the module (in -> hidden -> out).  B=300 is
    # deliberately not a tile multiple, exercising pad-to-tile + the
    # multi-tile partial-stats reduction path.
    B, IN_DIM, HIDDEN, OUT_DIM = 300, 256, 128, 256

    key = jax.random.PRNGKey(0)
    kx, kw1, kb1, kw2, kb2 = jax.random.split(key, 5)

    x = jax.random.normal(kx, (B, IN_DIM), dtype=jnp.float32)
    w1 = jax.random.normal(kw1, (IN_DIM, HIDDEN), dtype=jnp.float32) * 0.05
    b1 = jax.random.normal(kb1, (HIDDEN,), dtype=jnp.float32) * 0.01
    gamma = jnp.ones((HIDDEN,), dtype=jnp.float32)    # BatchNorm1d weight init
    beta = jnp.zeros((HIDDEN,), dtype=jnp.float32)    # BatchNorm1d bias init
    w2 = jax.random.normal(kw2, (HIDDEN, OUT_DIM), dtype=jnp.float32) * 0.05
    b2 = jax.random.normal(kb2, (OUT_DIM,), dtype=jnp.float32) * 0.01

    out = prediction_mlp(x, w1, b1, gamma, beta, w2, b2, tile_m=128)
    out = jax.block_until_ready(out)

    ref = reference_mlp(x, w1, b1, gamma, beta, w2, b2)
    assert out.shape == (B, OUT_DIM)
    # bf16 storage of the intermediate h introduces ~1e-3-level absolute
    # differences on O(0.5) outputs; tolerance still catches any real BN /
    # matmul bug by a wide margin.
    assert jnp.allclose(out, ref, atol=2e-2, rtol=2e-2), "mismatch vs reference"

    print("KERNEL_OK")
</pallas_src>

<mosaic_0001>
module attributes {stable_mosaic.version = 11 : i64} {
  func.func @layer1_stats_kernel(%arg0: i32, %arg1: memref<128x256xf32, #tpu.memory_space<vmem>>, %arg2: memref<256x128xf32, #tpu.memory_space<vmem>>, %arg3: memref<128x128xbf16, #tpu.memory_space<vmem>>, %arg4: memref<1x1x128xf32, #tpu.memory_space<vmem>>, %arg5: memref<1x1x128xf32, #tpu.memory_space<vmem>>) attributes {dimension_semantics = [#tpu.dimension_semantics<parallel>], iteration_bounds = array<i64: 3>, scalar_prefetch = 0 : i64, scratch_operands = 0 : i64, tpu.core_type = #tpu.core_type<tc>, window_params = [{transform_indices = @transform_0, window_bounds = array<i64: 128, 256>}, {pipeline_mode = #tpu.pipeline_mode<synchronous>, transform_indices = @transform_1, window_bounds = array<i64: 256, 128>}, {transform_indices = @transform_2, window_bounds = array<i64: 128, 128>}, {transform_indices = @transform_3, window_bounds = array<i64: 1, 1, 128>}, {transform_indices = @transform_4, window_bounds = array<i64: 1, 1, 128>}]} {
    %c0 = arith.constant 0 : index
    %c0_0 = arith.constant 0 : index
    %0 = vector.load %arg1[%c0, %c0_0] : memref<128x256xf32, #tpu.memory_space<vmem>>, vector<128x256xf32>
    %1 = arith.truncf %0 : vector<128x256xf32> to vector<128x256xbf16>
    %c0_1 = arith.constant 0 : index
    %c0_2 = arith.constant 0 : index
    %2 = vector.load %arg2[%c0_1, %c0_2] : memref<256x128xf32, #tpu.memory_space<vmem>>, vector<256x128xf32>
    %3 = arith.truncf %2 : vector<256x128xf32> to vector<256x128xbf16>
    %cst = arith.constant dense<0.000000e+00> : vector<128x128xf32>
    %4 = tpu.matmul %1, %3, %cst {dimension_numbers = #tpu.dot_dimension_numbers<[1], [0], [0], [1], [0, 0, 1, 1], [], []>} : vector<128x256xbf16>, vector<256x128xbf16>, vector<128x128xf32> -> vector<128x128xf32>
    %cst_3 = arith.constant dense<0.000000e+00> : vector<128xf32>
    %5 = vector.multi_reduction <add>, %4, %cst_3 [0] : vector<128x128xf32> to vector<128xf32>
    %6 = vector.shape_cast %5 : vector<128xf32> to vector<1x128xf32>
    %7 = vector.shape_cast %6 : vector<1x128xf32> to vector<1x1x128xf32>
    %c0_4 = arith.constant 0 : index
    %c0_5 = arith.constant 0 : index
    %c0_6 = arith.constant 0 : index
    %8 = vector.load %arg4[%c0_4, %c0_5, %c0_6] : memref<1x1x128xf32, #tpu.memory_space<vmem>>, vector<1x1x128xf32>
    tpu.vector_store %arg4[%c0_4, %c0_5, %c0_6], %7 {strides = array<i32>} : memref<1x1x128xf32, #tpu.memory_space<vmem>>, vector<1x1x128xf32>,
    %9 = arith.mulf %4, %4 : vector<128x128xf32>
    %cst_7 = arith.constant dense<0.000000e+00> : vector<128xf32>
    %10 = vector.multi_reduction <add>, %9, %cst_7 [0] : vector<128x128xf32> to vector<128xf32>
    %11 = vector.shape_cast %10 : vector<128xf32> to vector<1x128xf32>
    %12 = vector.shape_cast %11 : vector<1x128xf32> to vector<1x1x128xf32>
    %c0_8 = arith.constant 0 : index
    %c0_9 = arith.constant 0 : index
    %c0_10 = arith.constant 0 : index
    %13 = vector.load %arg5[%c0_8, %c0_9, %c0_10] : memref<1x1x128xf32, #tpu.memory_space<vmem>>, vector<1x1x128xf32>
    tpu.vector_store %arg5[%c0_8, %c0_9, %c0_10], %12 {strides = array<i32>} : memref<1x1x128xf32, #tpu.memory_space<vmem>>, vector<1x1x128xf32>,
    %14 = arith.truncf %4 : vector<128x128xf32> to vector<128x128xbf16>
    %c0_11 = arith.constant 0 : index
    %c0_12 = arith.constant 0 : index
    %15 = vector.load %arg3[%c0_11, %c0_12] : memref<128x128xbf16, #tpu.memory_space<vmem>>, vector<128x128xbf16>
    tpu.vector_store %arg3[%c0_11, %c0_12], %14 {strides = array<i32>} : memref<128x128xbf16, #tpu.memory_space<vmem>>, vector<128x128xbf16>,
    return
  }
  func.func @transform_0(%arg0: i32) -> (i32, i32) {
    %c0_i32 = arith.constant 0 : i32
    %c0_i32_0 = arith.constant 0 : i32
    return %arg0, %c0_i32 : i32, i32
  }
  func.func @transform_1(%arg0: i32) -> (i32, i32) {
    %c0_i32 = arith.constant 0 : i32
    %c0_i32_0 = arith.constant 0 : i32
    %c0_i32_1 = arith.constant 0 : i32
    return %c0_i32, %c0_i32_0 : i32, i32
  }
  func.func @transform_2(%arg0: i32) -> (i32, i32) {
    %c0_i32 = arith.constant 0 : i32
    %c0_i32_0 = arith.constant 0 : i32
    return %arg0, %c0_i32 : i32, i32
  }
  func.func @transform_3(%arg0: i32) -> (i32, i32, i32) {
    %c0_i32 = arith.constant 0 : i32
    %c0_i32_0 = arith.constant 0 : i32
    %c0_i32_1 = arith.constant 0 : i32
    return %arg0, %c0_i32, %c0_i32_0 : i32, i32, i32
  }
  func.func @transform_4(%arg0: i32) -> (i32, i32, i32) {
    %c0_i32 = arith.constant 0 : i32
    %c0_i32_0 = arith.constant 0 : i32
    %c0_i32_1 = arith.constant 0 : i32
    return %arg0, %c0_i32, %c0_i32_0 : i32, i32, i32
  }
}

</mosaic_0001>

<llo_original>
// kernel: tpu_custom_call.1
$region0: #{tpu_custom_call.1}
  #allocation0 [shape = 'u32[]', space=smem, size = 0x4, offset = 0x4, fixed_abs, tag = 'smem constant byte address 0x4 - core index']
  #allocation1 [shape = 'u32[72,128]{1,0:T(1,128)}', space=vmem, size = 0x9000, scoped, tag = 'internal scratch']
  %s0 = inlined_call_operand.hbm [shape: f32[384,256], index: 0, kind: input, shape index: {}]
  %s1 = inlined_call_operand.hbm [shape: f32[256,128], index: 1, kind: input, shape index: {}]
  %s2 = inlined_call_operand.hbm [shape: bf16[384,128], index: 2, kind: output, shape index: {0}]
  %s3 = inlined_call_operand.hbm [shape: f32[3,1,128], index: 3, kind: output, shape index: {1}]
  %s4 = inlined_call_operand.hbm [shape: f32[3,1,128], index: 4, kind: output, shape index: {2}]
  %5 = xla_tuple %s2, %s3, %s4
  %s6 = sld [smem:[#allocation0]]
  $region65: #{tpu_custom_call.1} parent=0
    _
  %s8 = ssub.s32 1, %s6
  %s9 = scalar_select 0, %s8, %s6
  $region1: #{tpu_custom_call.1} parent=0
    #allocation2 [shape = 'u8[262144]{0}', space=vmem, size = 0x40000, scoped, tag = 'input window, operand 0']
    #allocation3 [shape = 's32[2]{0}', space=sflag, size = 0x8, scoped, tag = 'scoped memory for tpu_custom_call.1']
    #allocation4 [shape = 's32[2]{0}', space=sflag, size = 0x8, scoped, tag = 'scoped memory for tpu_custom_call.1']
    #allocation5 [shape = 'u8[131072]{0}', space=vmem, size = 0x20000, scoped, tag = 'input window, operand 1, single buffered']
    #allocation6 [shape = 's32[1]{0}', space=sflag, size = 0x4, scoped, tag = 'scoped memory for tpu_custom_call.1']
    #allocation7 [shape = 'u8[65536]{0}', space=vmem, size = 0x10000, scoped, tag = 'output window, operand 0']
    #allocation8 [shape = 'u8[1024]{0}', space=vmem, size = 0x400, scoped, tag = 'output window, operand 1']
    #allocation9 [shape = 's32[2]{0}', space=sflag, size = 0x8, scoped, tag = 'scoped memory for tpu_custom_call.1']
    #allocation10 [shape = 'u8[1024]{0}', space=vmem, size = 0x400, scoped, tag = 'output window, operand 2']
    %10 = vsyncpa [#allocation3], 0
    %s11 = scalar_lea.sflag [#allocation3], 1
    %12 = vsyncpa %s11, 0
    %13 = vsyncpa [#allocation6], 0
    %14 = vsyncpa [#allocation4], 0
    %s15 = scalar_lea.sflag [#allocation4], 1
    %16 = vsyncpa %s15, 0
    %17 = vsyncpa [#allocation9], 0
    %s18 = scalar_lea.sflag [#allocation9], 1
    %19 = vsyncpa %s18, 0
    loop: start=0, step=1, limit=5
    $region2: #{tpu_custom_call.1} parent=1 // loop_pre_header
      _
    $region3: #{tpu_custom_call.1} parent=1 // loop_header
      %s21 = sphi 0, %s25
      %p22 = scmp.ge.s32.totalorder %s21, 5
      %s31 = sphi 0, %s33
      %s34 = sphi 0, %s31
      %s35 = sphi 0, %s34
      %s51 = sphi 0, %s35
      %s55 = sphi 0, %s55
      %s57 = sphi 0, %s55
      %s58 = sphi 0, %s57
      %s72 = sphi 0, %s58
      %s78 = sphi 0, %s80
      %s81 = sphi 0, %s78
      %s82 = sphi 0, %s81
      %s98 = sphi 0, %s82
      %s104 = sphi 0, %s106
      %s107 = sphi 0, %s104
      %s108 = sphi 0, %s107
      %s124 = sphi 0, %s108
      %s130 = sphi 0, %s132
      %s133 = sphi 0, %s130
      %s134 = sphi 0, %s133
      %s150 = sphi 0, %s134
    $region4: #{tpu_custom_call.1} parent=1 // loop_header_branch
      %24 = sbr.rel (%p22) target = $region8
    $region5: #{tpu_custom_call.1} parent=1 // loop_body
      %s26 = ssub.s32 %s21, 1
      %s27 = ssub.s32 %s21, 2
      %s28 = sadd.s32 %s21, 1
      %s29 = ssub.s32 %s21, %s28
      %p30 = scmp.eq.s32.totalorder %s29, 0
      %s32 = sadd.s32 %s31, 1
      %s33 = scalar_select %p30, %s31, %s32
      %p36 = pneg %p30
      %p37 = scmp.eq.s32.totalorder %s21, 2
      %p38 = por %p36, %p37
      %p39 = scmp.ne.s32.totalorder %s31, %s34
      %p40 = scmp.eq.s32.totalorder %s21, 0
      %p41 = por %p39, %p40
      %p42 = scmp.ne.s32.totalorder %s31, %s34
      %p43 = scmp.eq.s32.totalorder %s26, 2
      %p44 = por %p42, %p43
      %p45 = scmp.ne.s32.totalorder %s34, %s35
      %p46 = scmp.eq.s32.totalorder %s26, 0
      %p47 = por %p45, %p46
      %p48 = scmp.ne.s32.totalorder %s34, %s35
      %p49 = scmp.eq.s32.totalorder %s27, 2
      %p50 = por %p48, %p49
      %p52 = scmp.ne.s32.totalorder %s35, %s51
      %p53 = scmp.eq.s32.totalorder %s27, 0
      %p54 = por %p52, %p53
      %s56 = sadd.s32 %s55, 1
      %p59 = scmp.eq.s32.totalorder %s21, 2
      %p60 = scmp.ne.s32.totalorder %s55, %s57
      %p61 = scmp.eq.s32.totalorder %s21, 0
      %p62 = por %p60, %p61
      %p63 = scmp.ne.s32.totalorder %s55, %s57
      %p64 = scmp.eq.s32.totalorder %s26, 2
      %p65 = por %p63, %p64
      %p66 = scmp.ne.s32.totalorder %s57, %s58
      %p67 = scmp.eq.s32.totalorder %s26, 0
      %p68 = por %p66, %p67
      %p69 = scmp.ne.s32.totalorder %s57, %s58
      %p70 = scmp.eq.s32.totalorder %s27, 2
      %p71 = por %p69, %p70
      %p73 = scmp.ne.s32.totalorder %s58, %s72
      %p74 = scmp.eq.s32.totalorder %s27, 0
      %p75 = por %p73, %p74
      %s76 = ssub.s32 %s21, %s28
      %p77 = scmp.eq.s32.totalorder %s76, 0
      %s79 = sadd.s32 %s78, 1
      %s80 = scalar_select %p77, %s78, %s79
      %p83 = pneg %p77
      %p84 = scmp.eq.s32.totalorder %s21, 2
      %p85 = por %p83, %p84
      %p86 = scmp.ne.s32.totalorder %s78, %s81
      %p87 = scmp.eq.s32.totalorder %s21, 0
      %p88 = por %p86, %p87
      %p89 = scmp.ne.s32.totalorder %s78, %s81
      %p90 = scmp.eq.s32.totalorder %s26, 2
      %p91 = por %p89, %p90
      %p92 = scmp.ne.s32.totalorder %s81, %s82
      %p93 = scmp.eq.s32.totalorder %s26, 0
      %p94 = por %p92, %p93
      %p95 = scmp.ne.s32.totalorder %s81, %s82
      %p96 = scmp.eq.s32.totalorder %s27, 2
      %p97 = por %p95, %p96
      %p99 = scmp.ne.s32.totalorder %s82, %s98
      %p100 = scmp.eq.s32.totalorder %s27, 0
      %p101 = por %p99, %p100
      %s102 = ssub.s32 %s21, %s28
      %p103 = scmp.eq.s32.totalorder %s102, 0
      %s105 = sadd.s32 %s104, 1
      %s106 = scalar_select %p103, %s104, %s105
      %p109 = pneg %p103
      %p110 = scmp.eq.s32.totalorder %s21, 2
      %p111 = por %p109, %p110
      %p112 = scmp.ne.s32.totalorder %s104, %s107
      %p113 = scmp.eq.s32.totalorder %s21, 0
      %p114 = por %p112, %p113
      %p115 = scmp.ne.s32.totalorder %s104, %s107
      %p116 = scmp.eq.s32.totalorder %s26, 2
      %p117 = por %p115, %p116
      %p118 = scmp.ne.s32.totalorder %s107, %s108
      %p119 = scmp.eq.s32.totalorder %s26, 0
      %p120 = por %p118, %p119
      %p121 = scmp.ne.s32.totalorder %s107, %s108
      %p122 = scmp.eq.s32.totalorder %s27, 2
      %p123 = por %p121, %p122
      %p125 = scmp.ne.s32.totalorder %s108, %s124
      %p126 = scmp.eq.s32.totalorder %s27, 0
      %p127 = por %p125, %p126
      %s128 = ssub.s32 %s21, %s28
      %p129 = scmp.eq.s32.totalorder %s128, 0
      %s131 = sadd.s32 %s130, 1
      %s132 = scalar_select %p129, %s130, %s131
      %p135 = pneg %p129
      %p136 = scmp.eq.s32.totalorder %s21, 2
      %p137 = por %p135, %p136
      %p138 = scmp.ne.s32.totalorder %s130, %s133
      %p139 = scmp.eq.s32.totalorder %s21, 0
      %p140 = por %p138, %p139
      %p141 = scmp.ne.s32.totalorder %s130, %s133
      %p142 = scmp.eq.s32.totalorder %s26, 2
      %p143 = por %p141, %p142
      %p144 = scmp.ne.s32.totalorder %s133, %s134
      %p145 = scmp.eq.s32.totalorder %s26, 0
      %p146 = por %p144, %p145
      %p147 = scmp.ne.s32.totalorder %s133, %s134
      %p148 = scmp.eq.s32.totalorder %s27, 2
      %p149 = por %p147, %p148
      %p151 = scmp.ne.s32.totalorder %s134, %s150
      %p152 = scmp.eq.s32.totalorder %s27, 0
      %p153 = por %p151, %p152
      %p154 = scmp.le.s32.totalorder 1, %s21
      %p155 = scmp.lt.s32.totalorder %s21, 4
      %p156 = pnand %p154, %p155
      %p157 = pneg %p156
      // Predicated region
      $region9: #{tpu_custom_call.1} parent=5 // pred_check
        _
      $region10: #{tpu_custom_call.1} parent=5 // pred_check_branch
        %159 = sbr.rel (%p156) target = $region12
      $region11: #{tpu_custom_call.1} parent=5 // pred_region
        %s160 = ssub.s32 %s21, 1
        // Predicated region
        $region13: #{tpu_custom_call.1} parent=11 // pred_check
          %p161 = pneg %p68
        $region14: #{tpu_custom_call.1} parent=11 // pred_check_branch
          %163 = sbr.rel (%p161) target = $region16
        $region15: #{tpu_custom_call.1} parent=11 // pred_region
          %165 = vsyncadd [#allocation6], 0
          %s166 = sshll.u32 %s1, 4
          %s167 = int_to_ptr.hbm [resolvable:$true] %s166
          %s168 = sshll.u32 [#allocation5], 4
          %s169 = int_to_ptr.vmem [resolvable:$true] %s168
          %174 = dma.hbm_to_vmem [thread:$0]  %s167, 4096, %s169, [#allocation6], 128, 128, 8
        $region16: #{tpu_custom_call.1} parent=11 // pred_fallthru
          _
      $region12: #{tpu_custom_call.1} parent=5 // pred_fallthru
        _
      %p175 = scmp.lt.s32.totalorder %s21, 3
      // Predicated region
      $region17: #{tpu_custom_call.1} parent=5 // pred_check
        %p176 = pneg %p175
      $region18: #{tpu_custom_call.1} parent=5 // pred_check_branch
        %178 = sbr.rel (%p176) target = $region20
      $region19: #{tpu_custom_call.1} parent=5 // pred_region
        // Predicated region
        $region21: #{tpu_custom_call.1} parent=19 // pred_check
          %p179 = pneg %p41
        $region22: #{tpu_custom_call.1} parent=19 // pred_check_branch
          %181 = sbr.rel (%p179) target = $region24
        $region23: #{tpu_custom_call.1} parent=19 // pred_region
          %s182 = sand.u32 %s31, 1
          %s183 = scalar_lea.sflag [#allocation3], %s182
          %s184 = sand.u32 %s31, 1
          %s185 = smul.addr %s184, 256
          %s186 = scalar_lea.vmem [#allocation2], %s185
          %s187 = smul.u32 16, %s21
          %189 = vsyncadd %s183, 0
          %s190 = smul.addr %s187, 2
          %s191 = smul.addr %s190, 8
          %s192 = scalar_lea.hbm %s0, %s191
          %s193 = sshll.u32 %s192, 4
          %s194 = int_to_ptr.hbm [resolvable:$true] %s193
          %s195 = sshll.u32 %s186, 4
          %s196 = int_to_ptr.vmem [resolvable:$true] %s195
          %201 = dma.hbm_to_vmem [thread:$0]  %s194, 4096, %s196, %s183, 256, 256, 16
        $region24: #{tpu_custom_call.1} parent=19 // pred_fallthru
          _
      $region20: #{tpu_custom_call.1} parent=5 // pred_fallthru
        _
      %p202 = scmp.le.s32.totalorder 1, %s21
      %p203 = scmp.lt.s32.totalorder %s21, 4
      %p204 = pnand %p202, %p203
      %p205 = pneg %p204
      // Predicated region
      $region25: #{tpu_custom_call.1} parent=5 // pred_check
        _
      $region26: #{tpu_custom_call.1} parent=5 // pred_check_branch
        %207 = sbr.rel (%p204) target = $region28
      $region27: #{tpu_custom_call.1} parent=5 // pred_region
        %s208 = ssub.s32 %s21, 1
        %s209 = sand.u32 %s34, 1
        %s210 = scalar_lea.sflag [#allocation3], %s209
        %s211 = sand.u32 %s34, 1
        %s212 = smul.addr %s211, 256
        %s213 = scalar_lea.vmem [#allocation2], %s212
        // Predicated region
        $region29: #{tpu_custom_call.1} parent=27 // pred_check
          %p214 = pneg %p47
        $region30: #{tpu_custom_call.1} parent=27 // pred_check_branch
          %216 = sbr.rel (%p214) target = $region32
        $region31: #{tpu_custom_call.1} parent=27 // pred_region
          %218 = dma.done %s210, 4096
        $region32: #{tpu_custom_call.1} parent=27 // pred_fallthru
          _
        // Predicated region
        $region33: #{tpu_custom_call.1} parent=27 // pred_check
          %p219 = pneg %p68
        $region34: #{tpu_custom_call.1} parent=27 // pred_check_branch
          %221 = sbr.rel (%p219) target = $region36
        $region35: #{tpu_custom_call.1} parent=27 // pred_region
          %223 = dma.done [#allocation6], 4096
        $region36: #{tpu_custom_call.1} parent=27 // pred_fallthru
          _
        %s224 = sand.u32 %s34, 1
        %s225 = scalar_lea.sflag [#allocation3], %s224
        %s226 = sand.u32 %s34, 1
        %s227 = smul.addr %s226, 256
        %s228 = scalar_lea.vmem [#allocation2], %s227
        %p229 = pneg %p47
        %p230 = pneg %p44
        %p231 = pneg %p68
        %p232 = pneg %p65
        %p233 = pneg %p94
        %p234 = pneg %p91
        %s235 = sand.u32 %s81, 1
        %s236 = scalar_lea.sflag [#allocation4], %s235
        %s237 = sand.u32 %s81, 1
        %s238 = smul.addr %s237, 64
        %s239 = scalar_lea.vmem [#allocation7], %s238
        %p240 = pneg %p120
        %p241 = pneg %p117
        %s242 = sand.u32 %s26, 1
        %s243 = scalar_lea.sflag [#allocation9], %s242
        %s244 = sand.u32 %s107, 1
        %s245 = scalar_lea.vmem [#allocation8], %s244
        %p246 = pneg %p146
        %p247 = pneg %p143
        %s248 = sand.u32 %s26, 1
        %s249 = scalar_lea.sflag [#allocation9], %s248
        %s250 = sand.u32 %s133, 1
        %s251 = scalar_lea.vmem [#allocation10], %s250
        %s252 = smul.u32 16, %s26
        %s253 = smul.u32 16, %s26
        %v254 = vld [vmem:[%s213] sm:$0xff]
        %v255 = vld [vmem:[%s213 + $0x8] sm:$0xff]
        %v256 = vld [vmem:[%s213 + $0x10] sm:$0xff]
        %v257 = vld [vmem:[%s213 + $0x18] sm:$0xff]
        %v258 = vld [vmem:[%s213 + $0x20] sm:$0xff]
        %v259 = vld [vmem:[%s213 + $0x28] sm:$0xff]
        %v260 = vld [vmem:[%s213 + $0x30] sm:$0xff]
        %v261 = vld [vmem:[%s213 + $0x38] sm:$0xff]
        %v262 = vld [vmem:[%s213 + $0x40] sm:$0xff]
        %v263 = vld [vmem:[%s213 + $0x48] sm:$0xff]
        %v264 = vld [vmem:[%s213 + $0x50] sm:$0xff]
        %v265 = vld [vmem:[%s213 + $0x58] sm:$0xff]
        %v266 = vld [vmem:[%s213 + $0x60] sm:$0xff]
        %v267 = vld [vmem:[%s213 + $0x68] sm:$0xff]
        %v268 = vld [vmem:[%s213 + $0x70] sm:$0xff]
        %v269 = vld [vmem:[%s213 + $0x78] sm:$0xff]
        %v270 = vld [vmem:[%s213 + $0x80] sm:$0xff]
        %v271 = vld [vmem:[%s213 + $0x88] sm:$0xff]
        %v272 = vld [vmem:[%s213 + $0x90] sm:$0xff]
        %v273 = vld [vmem:[%s213 + $0x98] sm:$0xff]
        %v274 = vld [vmem:[%s213 + $0xa0] sm:$0xff]
        %v275 = vld [vmem:[%s213 + $0xa8] sm:$0xff]
        %v276 = vld [vmem:[%s213 + $0xb0] sm:$0xff]
        %v277 = vld [vmem:[%s213 + $0xb8] sm:$0xff]
        %v278 = vld [vmem:[%s213 + $0xc0] sm:$0xff]
        %v279 = vld [vmem:[%s213 + $0xc8] sm:$0xff]
        %v280 = vld [vmem:[%s213 + $0xd0] sm:$0xff]
        %v281 = vld [vmem:[%s213 + $0xd8] sm:$0xff]
        %v282 = vld [vmem:[%s213 + $0xe0] sm:$0xff]
        %v283 = vld [vmem:[%s213 + $0xe8] sm:$0xff]
        %v284 = vld [vmem:[%s213 + $0xf0] sm:$0xff]
        %v285 = vld [vmem:[%s213 + $0xf8] sm:$0xff]
        %v286 = vpack.c.bf16 %v256, %v254
        %v287 = vpack.c.bf16 %v257, %v255
        %v288 = vpack.c.bf16 %v260, %v258
        %v289 = vpack.c.bf16 %v261, %v259
        %v290 = vpack.c.bf16 %v264, %v262
        %v291 = vpack.c.bf16 %v265, %v263
        %v292 = vpack.c.bf16 %v268, %v266
        %v293 = vpack.c.bf16 %v269, %v267
        %v294 = vpack.c.bf16 %v272, %v270
        %v295 = vpack.c.bf16 %v273, %v271
        %v296 = vpack.c.bf16 %v276, %v274
        %v297 = vpack.c.bf16 %v277, %v275
        %v298 = vpack.c.bf16 %v280, %v278
        %v299 = vpack.c.bf16 %v281, %v279
        %v300 = vpack.c.bf16 %v284, %v282
        %v301 = vpack.c.bf16 %v285, %v283
        %v302 = vld [vmem:[#allocation5] sm:$0xff]
        %v303 = vld [vmem:[#allocation5 + $0x8] sm:$0xff]
        %v304 = vld [vmem:[#allocation5 + $0x10] sm:$0xff]
        %v305 = vld [vmem:[#allocation5 + $0x18] sm:$0xff]
        %v306 = vld [vmem:[#allocation5 + $0x20] sm:$0xff]
        %v307 = vld [vmem:[#allocation5 + $0x28] sm:$0xff]
        %v308 = vld [vmem:[#allocation5 + $0x30] sm:$0xff]
        %v309 = vld [vmem:[#allocation5 + $0x38] sm:$0xff]
        %v310 = vld [vmem:[#allocation5 + $0x40] sm:$0xff]
        %v311 = vld [vmem:[#allocation5 + $0x48] sm:$0xff]
        %v312 = vld [vmem:[#allocation5 + $0x50] sm:$0xff]
        %v313 = vld [vmem:[#allocation5 + $0x58] sm:$0xff]
        %v314 = vld [vmem:[#allocation5 + $0x60] sm:$0xff]
        %v315 = vld [vmem:[#allocation5 + $0x68] sm:$0xff]
        %v316 = vld [vmem:[#allocation5 + $0x70] sm:$0xff]
        %v317 = vld [vmem:[#allocation5 + $0x78] sm:$0xff]
        %v318 = vld [vmem:[#allocation5 + $0x80] sm:$0xff]
        %v319 = vld [vmem:[#allocation5 + $0x88] sm:$0xff]
        %v320 = vld [vmem:[#allocation5 + $0x90] sm:$0xff]
        %v321 = vld [vmem:[#allocation5 + $0x98] sm:$0xff]
        %v322 = vld [vmem:[#allocation5 + $0xa0] sm:$0xff]
        %v323 = vld [vmem:[#allocation5 + $0xa8] sm:$0xff]
        %v324 = vld [vmem:[#allocation5 + $0xb0] sm:$0xff]
        %v325 = vld [vmem:[#allocation5 + $0xb8] sm:$0xff]
        %v326 = vld [vmem:[#allocation5 + $0xc0] sm:$0xff]
        %v327 = vld [vmem:[#allocation5 + $0xc8] sm:$0xff]
        %v328 = vld [vmem:[#allocation5 + $0xd0] sm:$0xff]
        %v329 = vld [vmem:[#allocation5 + $0xd8] sm:$0xff]
        %v330 = vld [vmem:[#allocation5 + $0xe0] sm:$0xff]
        %v331 = vld [vmem:[#allocation5 + $0xe8] sm:$0xff]
        %v332 = vld [vmem:[#allocation5 + $0xf0] sm:$0xff]
        %v333 = vld [vmem:[#allocation5 + $0xf8] sm:$0xff]
        %v334 = vpack.c.bf16 %v303, %v302
        %v335 = vpack.c.bf16 %v305, %v304
        %v336 = vpack.c.bf16 %v307, %v306
        %v337 = vpack.c.bf16 %v309, %v308
        %v338 = vpack.c.bf16 %v311, %v310
        %v339 = vpack.c.bf16 %v313, %v312
        %v340 = vpack.c.bf16 %v315, %v314
        %v341 = vpack.c.bf16 %v317, %v316
        %v342 = vpack.c.bf16 %v319, %v318
        %v343 = vpack.c.bf16 %v321, %v320
        %v344 = vpack.c.bf16 %v323, %v322
        %v345 = vpack.c.bf16 %v325, %v324
        %v346 = vpack.c.bf16 %v327, %v326
        %v347 = vpack.c.bf16 %v329, %v328
        %v348 = vpack.c.bf16 %v331, %v330
        %v349 = vpack.c.bf16 %v333, %v332
        %350 = vmatpush.bf16.msra.mxu0 %v341
        %351 = vmatpush.bf16.msra.mxu0 %v340
        %352 = vmatpush.bf16.msra.mxu0 %v339
        %353 = vmatpush.bf16.msra.mxu0 %v338
        %354 = vmatpush.bf16.msra.mxu0 %v337
        %355 = vmatpush.bf16.msra.mxu0 %v336
        %356 = vmatpush.bf16.msra.mxu0 %v335
        %357 = vmatpush.bf16.msra.mxu0 %v334
        %358 = vmatmul.bf16.gmra.mxu0 %v286
        %v359 = vpop.f32.mrf.mxu0
        %v360 = vadd.f32 0.0, %v359
        %v361 = vpop.f32.mrf.mxu0
        %v362 = vadd.f32 0.0, %v361
        %363 = vmatmul.bf16.gmra.mxu0 %v288
        %v364 = vpop.f32.mrf.mxu0
        %v365 = vadd.f32 0.0, %v364
        %v366 = vpop.f32.mrf.mxu0
        %v367 = vadd.f32 0.0, %v366
        %368 = vmatmul.bf16.gmra.mxu0 %v290
        %v369 = vpop.f32.mrf.mxu0
        %v370 = vadd.f32 0.0, %v369
        %v371 = vpop.f32.mrf.mxu0
        %v372 = vadd.f32 0.0, %v371
        %373 = vmatmul.bf16.gmra.mxu0 %v292
        %v374 = vpop.f32.mrf.mxu0
        %v375 = vadd.f32 0.0, %v374
        %v376 = vpop.f32.mrf.mxu0
        %v377 = vadd.f32 0.0, %v376
        %378 = vmatmul.bf16.gmra.mxu0 %v294
        %v379 = vpop.f32.mrf.mxu0
        %v380 = vadd.f32 0.0, %v379
        %v381 = vpop.f32.mrf.mxu0
        %v382 = vadd.f32 0.0, %v381
        %383 = vmatmul.bf16.gmra.mxu0 %v296
        %v384 = vpop.f32.mrf.mxu0
        %v385 = vadd.f32 0.0, %v384
        %v386 = vpop.f32.mrf.mxu0
        %v387 = vadd.f32 0.0, %v386
        %388 = vmatmul.bf16.gmra.mxu0 %v298
        %v389 = vpop.f32.mrf.mxu0
        %v390 = vadd.f32 0.0, %v389
        %v391 = vpop.f32.mrf.mxu0
        %v392 = vadd.f32 0.0, %v391
        %393 = vmatmul.bf16.gmra.mxu0 %v300
        %v394 = vpop.f32.mrf.mxu0
        %v395 = vadd.f32 0.0, %v394
        %v396 = vpop.f32.mrf.mxu0
        %v397 = vadd.f32 0.0, %v396
        %398 = vdwg.mxu0
        %399 = vmatpush.bf16.msra.mxu0 %v349
        %400 = vmatpush.bf16.msra.mxu0 %v348
        %401 = vmatpush.bf16.msra.mxu0 %v347
        %402 = vmatpush.bf16.msra.mxu0 %v346
        %403 = vmatpush.bf16.msra.mxu0 %v345
        %404 = vmatpush.bf16.msra.mxu0 %v344
        %405 = vmatpush.bf16.msra.mxu0 %v343
        %406 = vmatpush.bf16.msra.mxu0 %v342
        %407 = vmatmul.bf16.gmra.mxu0 %v287
        %v408 = vpop.f32.mrf.mxu0
        %v409 = vadd.f32 %v360, %v408
        %v410 = vpop.f32.mrf.mxu0
        %v411 = vadd.f32 %v362, %v410
        %412 = vmatmul.bf16.gmra.mxu0 %v289
        %v413 = vpop.f32.mrf.mxu0
        %v414 = vadd.f32 %v365, %v413
        %v415 = vpop.f32.mrf.mxu0
        %v416 = vadd.f32 %v367, %v415
        %417 = vmatmul.bf16.gmra.mxu0 %v291
        %v418 = vpop.f32.mrf.mxu0
        %v419 = vadd.f32 %v370, %v418
        %v420 = vpop.f32.mrf.mxu0
        %v421 = vadd.f32 %v372, %v420
        %422 = vmatmul.bf16.gmra.mxu0 %v293
        %v423 = vpop.f32.mrf.mxu0
        %v424 = vadd.f32 %v375, %v423
        %v425 = vpop.f32.mrf.mxu0
        %v426 = vadd.f32 %v377, %v425
        %427 = vmatmul.bf16.gmra.mxu0 %v295
        %v428 = vpop.f32.mrf.mxu0
        %v429 = vadd.f32 %v380, %v428
        %v430 = vpop.f32.mrf.mxu0
        %v431 = vadd.f32 %v382, %v430
        %432 = vmatmul.bf16.gmra.mxu0 %v297
        %v433 = vpop.f32.mrf.mxu0
        %v434 = vadd.f32 %v385, %v433
        %v435 = vpop.f32.mrf.mxu0
        %v436 = vadd.f32 %v387, %v435
        %437 = vmatmul.bf16.gmra.mxu0 %v299
        %v438 = vpop.f32.mrf.mxu0
        %v439 = vadd.f32 %v390, %v438
        %v440 = vpop.f32.mrf.mxu0
        %v441 = vadd.f32 %v392, %v440
        %442 = vmatmul.bf16.gmra.mxu0 %v301
        %v443 = vpop.f32.mrf.mxu0
        %v444 = vadd.f32 %v395, %v443
        %v445 = vpop.f32.mrf.mxu0
        %v446 = vadd.f32 %v397, %v445
        %447 = vdwg.mxu0
        %v448 = vadd.f32 %v409, %v411
        %v449 = vadd.f32 %v448, %v414
        %v450 = vadd.f32 %v449, %v416
        %v451 = vadd.f32 %v450, %v419
        %v452 = vadd.f32 %v451, %v421
        %v453 = vadd.f32 %v452, %v424
        %v454 = vadd.f32 %v453, %v426
        %v455 = vadd.f32 %v454, %v429
        %v456 = vadd.f32 %v455, %v431
        %v457 = vadd.f32 %v456, %v434
        %v458 = vadd.f32 %v457, %v436
        %v459 = vadd.f32 %v458, %v439
        %v460 = vadd.f32 %v459, %v441
        %v461 = vadd.f32 %v460, %v444
        %v462 = vadd.f32 %v461, %v446
        %v463 = vrot.slane %v462, 4
        %v464 = vadd.f32 %v462, %v463
        %v465 = vrot.slane %v464, 2
        %v466 = vadd.f32 %v464, %v465
        %v467 = vrot.slane %v466, 1
        %v468 = vadd.f32 %v466, %v467
        %469 = vst [vmem:[%s245] sm:$0x1] %v468
        %v470 = vmul.f32 %v409, %v409
        %v471 = vmul.f32 %v411, %v411
        %v472 = vmul.f32 %v414, %v414
        %v473 = vmul.f32 %v416, %v416
        %v474 = vmul.f32 %v419, %v419
        %v475 = vmul.f32 %v421, %v421
        %v476 = vmul.f32 %v424, %v424
        %v477 = vmul.f32 %v426, %v426
        %v478 = vmul.f32 %v429, %v429
        %v479 = vmul.f32 %v431, %v431
        %v480 = vmul.f32 %v434, %v434
        %v481 = vmul.f32 %v436, %v436
        %v482 = vmul.f32 %v439, %v439
        %v483 = vmul.f32 %v441, %v441
        %v484 = vmul.f32 %v444, %v444
        %v485 = vmul.f32 %v446, %v446
        %v486 = vadd.f32 %v470, %v471
        %v487 = vadd.f32 %v486, %v472
        %v488 = vadd.f32 %v487, %v473
        %v489 = vadd.f32 %v488, %v474
        %v490 = vadd.f32 %v489, %v475
        %v491 = vadd.f32 %v490, %v476
        %v492 = vadd.f32 %v491, %v477
        %v493 = vadd.f32 %v492, %v478
        %v494 = vadd.f32 %v493, %v479
        %v495 = vadd.f32 %v494, %v480
        %v496 = vadd.f32 %v495, %v481
        %v497 = vadd.f32 %v496, %v482
        %v498 = vadd.f32 %v497, %v483
        %v499 = vadd.f32 %v498, %v484
        %v500 = vadd.f32 %v499, %v485
        %v501 = vrot.slane %v500, 4
        %v502 = vadd.f32 %v500, %v501
        %v503 = vrot.slane %v502, 2
        %v504 = vadd.f32 %v502, %v503
        %v505 = vrot.slane %v504, 1
        %v506 = vadd.f32 %v504, %v505
        %507 = vst [vmem:[%s251] sm:$0x1] %v506
        %v508 = vpack.c.bf16 %v409, %v409
        %v509 = vpack.c.bf16 %v411, %v411
        %v510 = vpack.c.bf16 %v414, %v414
        %v511 = vpack.c.bf16 %v416, %v416
        %v512 = vpack.c.bf16 %v419, %v419
        %v513 = vpack.c.bf16 %v421, %v421
        %v514 = vpack.c.bf16 %v424, %v424
        %v515 = vpack.c.bf16 %v426, %v426
        %v516 = vpack.c.bf16 %v429, %v429
        %v517 = vpack.c.bf16 %v431, %v431
        %v518 = vpack.c.bf16 %v434, %v434
        %v519 = vpack.c.bf16 %v436, %v436
        %v520 = vpack.c.bf16 %v439, %v439
        %v521 = vpack.c.bf16 %v441, %v441
        %v522 = vpack.c.bf16 %v444, %v444
        %v523 = vpack.c.bf16 %v446, %v446
        %524 = vst [vmem:[%s239] sm:$0xf] %v508
        %525 = vst [vmem:[%s239 + $0x4] sm:$0xf] %v509
        %526 = vst [vmem:[%s239 + $0x8] sm:$0xf] %v510
        %527 = vst [vmem:[%s239 + $0xc] sm:$0xf] %v511
        %528 = vst [vmem:[%s239 + $0x10] sm:$0xf] %v512
        %529 = vst [vmem:[%s239 + $0x14] sm:$0xf] %v513
        %530 = vst [vmem:[%s239 + $0x18] sm:$0xf] %v514
        %531 = vst [vmem:[%s239 + $0x1c] sm:$0xf] %v515
        %532 = vst [vmem:[%s239 + $0x20] sm:$0xf] %v516
        %533 = vst [vmem:[%s239 + $0x24] sm:$0xf] %v517
        %534 = vst [vmem:[%s239 + $0x28] sm:$0xf] %v518
        %535 = vst [vmem:[%s239 + $0x2c] sm:$0xf] %v519
        %536 = vst [vmem:[%s239 + $0x30] sm:$0xf] %v520
        %537 = vst [vmem:[%s239 + $0x34] sm:$0xf] %v521
        %538 = vst [vmem:[%s239 + $0x38] sm:$0xf] %v522
        %539 = vst [vmem:[%s239 + $0x3c] sm:$0xf] %v523
        %s540 = sand.u32 %s81, 1
        %s541 = scalar_lea.sflag [#allocation4], %s540
        %s542 = sand.u32 %s81, 1
        %s543 = smul.addr %s542, 64
        %s544 = scalar_lea.vmem [#allocation7], %s543
        %s545 = sand.u32 %s26, 1
        %s546 = scalar_lea.sflag [#allocation9], %s545
        %s547 = sand.u32 %s107, 1
        %s548 = scalar_lea.vmem [#allocation8], %s547
        %s549 = sand.u32 %s26, 1
        %s550 = scalar_lea.sflag [#allocation9], %s549
        %s551 = sand.u32 %s133, 1
        %s552 = scalar_lea.vmem [#allocation10], %s551
        // Predicated region
        $region37: #{tpu_custom_call.1} parent=27 // pred_check
          %p553 = pneg %p91
        $region38: #{tpu_custom_call.1} parent=27 // pred_check_branch
          %555 = sbr.rel (%p553) target = $region40
        $region39: #{tpu_custom_call.1} parent=27 // pred_region
          %s556 = smul.u32 16, %s26
          %558 = vsyncadd %s541, 0
          %s559 = smul.addr %s556, 4
          %s560 = scalar_lea.hbm %s2, %s559
          %s561 = sshll.u32 %s544, 4
          %s562 = int_to_ptr.vmem [resolvable:$true] %s561
          %s563 = sshll.u32 %s560, 4
          %s564 = int_to_ptr.hbm [resolvable:$true] %s563
          %569 = dma.vmem_to_hbm [thread:$0]  %s562, 1024, %s564, %s541, 64, 64, 4
        $region40: #{tpu_custom_call.1} parent=27 // pred_fallthru
          _
        // Predicated region
        $region41: #{tpu_custom_call.1} parent=27 // pred_check
          %p570 = pneg %p117
        $region42: #{tpu_custom_call.1} parent=27 // pred_check_branch
          %572 = sbr.rel (%p570) target = $region44
        $region43: #{tpu_custom_call.1} parent=27 // pred_region
          %574 = vsyncadd %s546, 0
          %s575 = scalar_lea.hbm %s3, %s26
          %s577 = sshll.u32 %s548, 4
          %s578 = int_to_ptr.vmem [resolvable:$true] %s577
          %s579 = sshll.u32 %s575, 4
          %s580 = int_to_ptr.hbm [resolvable:$true] %s579
          %582 = dma.vmem_to_hbm [thread:$0]  %s578, 16, %s580, %s546
        $region44: #{tpu_custom_call.1} parent=27 // pred_fallthru
          _
        // Predicated region
        $region45: #{tpu_custom_call.1} parent=27 // pred_check
          %p583 = pneg %p143
        $region46: #{tpu_custom_call.1} parent=27 // pred_check_branch
          %585 = sbr.rel (%p583) target = $region48
        $region47: #{tpu_custom_call.1} parent=27 // pred_region
          %587 = vsyncadd %s550, 0
          %s588 = scalar_lea.hbm %s4, %s26
          %s590 = sshll.u32 %s552, 4
          %s591 = int_to_ptr.vmem [resolvable:$true] %s590
          %s592 = sshll.u32 %s588, 4
          %s593 = int_to_ptr.hbm [resolvable:$true] %s592
          %595 = dma.vmem_to_hbm [thread:$0]  %s591, 16, %s593, %s550
        $region48: #{tpu_custom_call.1} parent=27 // pred_fallthru
          _
      $region28: #{tpu_custom_call.1} parent=5 // pred_fallthru
        _
      %p596 = scmp.le.s32.totalorder 2, %s21
      // Predicated region
      $region49: #{tpu_custom_call.1} parent=5 // pred_check
        %p597 = pneg %p596
      $region50: #{tpu_custom_call.1} parent=5 // pred_check_branch
        %599 = sbr.rel (%p597) target = $region52
      $region51: #{tpu_custom_call.1} parent=5 // pred_region
        %s600 = ssub.s32 %s21, 2
        // Predicated region
        $region53: #{tpu_custom_call.1} parent=51 // pred_check
          %p601 = pneg %p97
        $region54: #{tpu_custom_call.1} parent=51 // pred_check_branch
          %603 = sbr.rel (%p601) target = $region56
        $region55: #{tpu_custom_call.1} parent=51 // pred_region
          %s604 = sand.u32 %s82, 1
          %s605 = scalar_lea.sflag [#allocation4], %s604
          %s606 = sand.u32 %s82, 1
          %s607 = smul.addr %s606, 64
          %s608 = scalar_lea.vmem [#allocation7], %s607
          %610 = dma.done %s605, 1024
        $region56: #{tpu_custom_call.1} parent=51 // pred_fallthru
          _
        // Predicated region
        $region57: #{tpu_custom_call.1} parent=51 // pred_check
          %p611 = pneg %p123
        $region58: #{tpu_custom_call.1} parent=51 // pred_check_branch
          %613 = sbr.rel (%p611) target = $region60
        $region59: #{tpu_custom_call.1} parent=51 // pred_region
          %s614 = sand.u32 %s27, 1
          %s615 = scalar_lea.sflag [#allocation9], %s614
          %s616 = sand.u32 %s108, 1
          %s617 = scalar_lea.vmem [#allocation8], %s616
          %619 = dma.done %s615, 16
        $region60: #{tpu_custom_call.1} parent=51 // pred_fallthru
          _
        // Predicated region
        $region61: #{tpu_custom_call.1} parent=51 // pred_check
          %p620 = pneg %p149
        $region62: #{tpu_custom_call.1} parent=51 // pred_check_branch
          %622 = sbr.rel (%p620) target = $region64
        $region63: #{tpu_custom_call.1} parent=51 // pred_region
          %s623 = sand.u32 %s27, 1
          %s624 = scalar_lea.sflag [#allocation9], %s623
          %s625 = sand.u32 %s134, 1
          %s626 = scalar_lea.vmem [#allocation10], %s625
          %628 = dma.done %s624, 16
        $region64: #{tpu_custom_call.1} parent=51 // pred_fallthru
          _
      $region52: #{tpu_custom_call.1} parent=5 // pred_fallthru
        _
    $region6: #{tpu_custom_call.1} parent=1 // loop_footer
      %s25 = sadd.s32 1, %s21
    $region7: #{tpu_custom_call.1} parent=1 // loop_footer_branch
      %20 = sbr.rel target = $region3
    $region8: #{tpu_custom_call.1} parent=1 // loop_exit
      _
    %629 = vsyncpa [#allocation3], 1
    %s630 = scalar_lea.sflag [#allocation3], 1
    %631 = vsyncpa %s630, 1
    %632 = vsyncpa [#allocation6], 1
    %633 = vsyncpa [#allocation4], 1
    %s634 = scalar_lea.sflag [#allocation4], 1
    %635 = vsyncpa %s634, 1
    %636 = vsyncpa [#allocation9], 1
    %s637 = scalar_lea.sflag [#allocation9], 1
    %638 = vsyncpa %s637, 1

</llo_original>
